<compile_context>
chip_gen: v6e
topology: v6e:2x2x1
jax: 0.10.0
libtpu: 0.0.40
codegen_flags: <defaults>
</compile_context>

<pallas_src>
import math

import jax
import jax.numpy as jnp
from jax.experimental import pallas as pl
from jax.experimental.pallas import tpu as pltpu


def _round_up(x, m):
    return ((x + m - 1) // m) * m


def _make_gather_kernel(rows_per_tile, d):
    """Gather `rows_per_tile` rows of a packed [cos | sin] table per grid step."""

    def kernel(pos_ref,              # SMEM  (rows_padded,) int32      [scalar prefetch]
               tab_hbm,              # HBM   (max_pos, 2*d) f32  packed [cos | sin]
               cos_out, sin_out,     # VMEM  (rows_per_tile, d) output blocks
               buf,                  # VMEM  (rows_per_tile, 2*d) scratch
               sem):                 # DMA semaphore (1,)
        base = pl.program_id(0) * rows_per_tile

        # Issue one (1, 2*d) row DMA per gathered row.  Statically unrolled so the
        # SMEM index reads + DMA descriptor issues co-schedule; all DMAs stay in
        # flight concurrently and signal the same semaphore.
        for r in range(rows_per_tile):
            p = pos_ref[base + r]
            pltpu.make_async_copy(tab_hbm.at[pl.ds(p, 1)],       # (1, 2*d) HBM row
                                  buf.at[pl.ds(r, 1)],           # (1, 2*d) VMEM row
                                  sem.at[0]).start()

        # Single aggregate wait: DMA semaphores count bytes, so a descriptor sized
        # to the full tile buffer waits for all rows_per_tile row copies at once.
        pltpu.make_async_copy(tab_hbm.at[pl.ds(0, rows_per_tile)],
                              buf,
                              sem.at[0]).wait()

        # Lane-tile-aligned split of the packed rows: lanes [0, d) -> cos,
        # lanes [d, 2*d) -> sin.  With d == 128 these are dense, unmasked
        # (rows_per_tile, 128) stores directly into the output blocks.
        cos_out[...] = buf[:, :d]
        sin_out[...] = buf[:, d:]

    return kernel


def rotary_embedding_lookup(packed_cos_sin, position_ids, *, rows_per_tile=64):
    """Pallas gather of rows of a packed [cos | sin] RoPE table.

    packed_cos_sin: (max_position_dim, 2*per_head_dim) float32,
                    [:, :D] = cos table, [:, D:] = sin table.
    position_ids:   (batch, input_len) integer.
    Returns (cos, sin), each (batch, input_len, 1, per_head_dim) float32.
    """
    batch, input_len = position_ids.shape
    max_pos, two_d = packed_cos_sin.shape
    d = two_d // 2
    assert max_pos >= 8, "position table too small"

    rows = batch * input_len
    # Adaptive tile size: multiple of 8 (f32 sublanes), no larger than needed,
    # and no larger than the table (keeps the aggregate-wait descriptor in-bounds).
    rpt = min(rows_per_tile, _round_up(rows, 8), (max_pos // 8) * 8)
    rpt = max(8, rpt - rpt % 8)
    n_tiles = pl.cdiv(rows, rpt)
    rows_padded = n_tiles * rpt

    pos_flat = position_ids.reshape(rows).astype(jnp.int32)
    if rows_padded != rows:
        # Pad only the tiny index vector (safe SMEM reads in the ragged tail tile;
        # padded rows gather position 0 and are masked out of the output writeback).
        pos_flat = jnp.pad(pos_flat, (0, rows_padded - rows))

    cos_g, sin_g = pl.pallas_call(
        _make_gather_kernel(rpt, d),
        out_shape=(jax.ShapeDtypeStruct((rows, d), packed_cos_sin.dtype),
                   jax.ShapeDtypeStruct((rows, d), packed_cos_sin.dtype)),
        grid_spec=pltpu.PrefetchScalarGridSpec(
            num_scalar_prefetch=1,                         # position ids -> SMEM
            grid=(n_tiles,),
            in_specs=[pl.BlockSpec(memory_space=pl.ANY)],  # packed table stays in HBM
            out_specs=[pl.BlockSpec((rpt, d), lambda i, pos: (i, 0)),
                       pl.BlockSpec((rpt, d), lambda i, pos: (i, 0))],
            scratch_shapes=[pltpu.VMEM((rpt, 2 * d), packed_cos_sin.dtype),
                            pltpu.SemaphoreType.DMA((1,))],
        ),
        compiler_params=pltpu.CompilerParams(
            dimension_semantics=("parallel",),             # tiles are independent
        ),
    )(pos_flat, packed_cos_sin)

    cos = cos_g.reshape(batch, input_len, 1, d)
    sin = sin_g.reshape(batch, input_len, 1, d)
    return cos, sin


class RotaryEmbedding:
    """JAX port of the TensorRT-LLM RotaryEmbedding module's forward pass."""

    def __init__(self, per_head_dim=128, max_position_dim=8192, seq_length=2048,
                 base=10000.0):
        self.per_head_dim = per_head_dim
        self.max_position_dim = max_position_dim
        self.seq_length = seq_length
        self.base = base
        # Embedding-table "weights": the standard RoPE cos/sin cache that the Qwen
        # checkpoint stores in position_embedding_{cos,sin}.
        inv_freq = base ** (jnp.arange(0, per_head_dim, 2, dtype=jnp.float32)
                            / -per_head_dim)
        freqs = jnp.outer(jnp.arange(max_position_dim, dtype=jnp.float32), inv_freq)
        emb = jnp.concatenate([freqs, freqs], axis=-1)            # (max_pos, D)
        self.position_embedding_cos = jnp.cos(emb).astype(jnp.float32)
        self.position_embedding_sin = jnp.sin(emb).astype(jnp.float32)
        # Lane-packed [cos | sin] table: one (1, 2*D) DMA gathers both per row.
        self._packed_cos_sin = jnp.concatenate(
            [self.position_embedding_cos, self.position_embedding_sin], axis=-1)

    def forward(self, input_ids, position_ids):
        batch, input_len = input_ids.shape
        if input_len <= self.seq_length:
            cos, sin = rotary_embedding_lookup(self._packed_cos_sin, position_ids)
        else:
            # TODO(synk): NTK-alpha long-context branch is trace-time scalar math plus
            # an on-the-fly cos/sin table (no gather); computed in plain JAX.
            d = self.per_head_dim
            context_value = math.log(input_len / self.seq_length) / math.log(2) + 1.0
            ntk_alpha = 2.0 ** math.ceil(context_value) - 1.0
            ntk_alpha = ntk_alpha ** (d / (d - 2))
            ntk_base = self.base * ntk_alpha
            inv_freq = ntk_base ** (jnp.arange(0, d, 2, dtype=jnp.float32) / -d)
            seq = jnp.arange(input_len * 2, dtype=jnp.float32)
            freqs = jnp.outer(seq, inv_freq)
            emb = jnp.concatenate([freqs, freqs], axis=1)          # (2*input_len, D)
            cos_full = jnp.cos(emb)[:input_len]
            sin_full = jnp.sin(emb)[:input_len]
            cos = jnp.broadcast_to(cos_full[None, :, None, :],
                                   (batch, input_len, 1, d)).astype(jnp.float32)
            sin = jnp.broadcast_to(sin_full[None, :, None, :],
                                   (batch, input_len, 1, d)).astype(jnp.float32)
        rotary_pos_emb = [(cos, sin), (cos, sin)]
        return rotary_pos_emb


if __name__ == "__main__":
    # Small deterministic config consistent with the module.
    batch, seq = 2, 8
    per_head_dim = 128          # module default; exactly lane-dense on TPU
    max_position_dim = 64       # small table for the demo
    seq_length = 32

    rope = RotaryEmbedding(per_head_dim=per_head_dim,
                           max_position_dim=max_position_dim,
                           seq_length=seq_length, base=10000.0)

    key = jax.random.PRNGKey(0)
    k_ids, k_pos = jax.random.split(key)
    input_ids = jax.random.randint(k_ids, (batch, seq), 0, 1000, dtype=jnp.int32)
    position_ids = jax.random.randint(k_pos, (batch, seq), 0, max_position_dim,
                                      dtype=jnp.int32)

    rotary_pos_emb = rope.forward(input_ids, position_ids)
    (cos, sin), _ = rotary_pos_emb
    cos = jax.block_until_ready(cos)
    sin = jax.block_until_ready(sin)

    # Reference: plain-JAX embedding gather.
    cos_ref = rope.position_embedding_cos[position_ids].reshape(
        batch, seq, 1, per_head_dim)
    sin_ref = rope.position_embedding_sin[position_ids].reshape(
        batch, seq, 1, per_head_dim)

    assert cos.shape == (batch, seq, 1, per_head_dim) and cos.dtype == jnp.float32
    assert sin.shape == (batch, seq, 1, per_head_dim) and sin.dtype == jnp.float32
    assert jnp.allclose(cos, cos_ref), "cos gather mismatch vs reference"
    assert jnp.allclose(sin, sin_ref), "sin gather mismatch vs reference"

    # Ragged tile exercise: row count not a multiple of 8 (masked final block).
    ragged_pos = position_ids[:, :seq - 3]
    ragged_ids = input_ids[:, :seq - 3]
    (cos_r, sin_r), _ = rope.forward(ragged_ids, ragged_pos)
    cos_r = jax.block_until_ready(cos_r)
    cos_r_ref = rope.position_embedding_cos[ragged_pos].reshape(
        batch, seq - 3, 1, per_head_dim)
    sin_r_ref = rope.position_embedding_sin[ragged_pos].reshape(
        batch, seq - 3, 1, per_head_dim)
    assert jnp.allclose(cos_r, cos_r_ref), "ragged cos gather mismatch"
    assert jnp.allclose(sin_r, sin_r_ref), "ragged sin gather mismatch"

    # Exercise the long-context (NTK) branch as well (plain JAX, shape check only).
    long_len = seq_length * 2
    long_ids = jnp.zeros((batch, long_len), dtype=jnp.int32)
    long_pos = jnp.broadcast_to(jnp.arange(long_len, dtype=jnp.int32),
                                (batch, long_len))
    (cos_l, sin_l), _ = rope.forward(long_ids, long_pos)
    assert cos_l.shape == (batch, long_len, 1, per_head_dim)
    assert sin_l.shape == (batch, long_len, 1, per_head_dim)

    print("KERNEL_OK")
</pallas_src>

<mosaic_0001>
module attributes {stable_mosaic.version = 11 : i64} {
  func.func @kernel(%arg0: i32, %arg1: memref<16xi32, #tpu.memory_space<smem>>, %arg2: memref<64x256xf32, #tpu.memory_space<any>>, %arg3: memref<16x128xf32, #tpu.memory_space<vmem>>, %arg4: memref<16x128xf32, #tpu.memory_space<vmem>>, %arg5: memref<16x256xf32, #tpu.memory_space<vmem>>, %arg6: memref<1x!tpu.dma_semaphore, #tpu.memory_space<semaphore_mem>>) attributes {dimension_semantics = [#tpu.dimension_semantics<parallel>], iteration_bounds = array<i64: 1>, scalar_prefetch = 1 : i64, scratch_operands = 2 : i64, tpu.core_type = #tpu.core_type<tc>, window_params = [{}, {transform_indices = @transform_1, window_bounds = array<i64: 16, 128>}, {transform_indices = @transform_2, window_bounds = array<i64: 16, 128>}]} {
    %c16_i32 = arith.constant 16 : i32
    %0 = arith.muli %arg0, %c16_i32 : i32
    %c0_i32 = arith.constant 0 : i32
    %1 = arith.addi %0, %c0_i32 : i32
    %2 = arith.index_cast %1 : i32 to index
    %3 = memref.load %arg1[%2] : memref<16xi32, #tpu.memory_space<smem>>
    %c0_i32_0 = arith.constant 0 : i32
    %c0_i32_1 = arith.constant 0 : i32
    %4 = tpu.memref_slice %arg2[%3, %c0_i32_1] : memref<64x256xf32, #tpu.memory_space<any>> -> memref<1x256xf32, #tpu.memory_space<any>>
    %c0_i32_2 = arith.constant 0 : i32
    %c0_i32_3 = arith.constant 0 : i32
    %5 = tpu.memref_slice %arg5[%c0_i32_2, %c0_i32_3] : memref<16x256xf32, #tpu.memory_space<vmem>> -> memref<1x256xf32, #tpu.memory_space<vmem>>
    %6 = tpu.memref_slice %arg6[%c0_i32_0] : memref<1x!tpu.dma_semaphore, #tpu.memory_space<semaphore_mem>> -> memref<1x!tpu.dma_semaphore, #tpu.memory_space<semaphore_mem>>
    %7 = tpu.memref_squeeze %6 : memref<1x!tpu.dma_semaphore, #tpu.memory_space<semaphore_mem>> -> memref<!tpu.dma_semaphore, #tpu.memory_space<semaphore_mem>>
    tpu.enqueue_dma source(%4 : memref<1x256xf32, #tpu.memory_space<any>>) target(%5 : memref<1x256xf32, #tpu.memory_space<vmem>>) target_semaphore(%7 : memref<!tpu.dma_semaphore, #tpu.memory_space<semaphore_mem>>)
    %c1_i32 = arith.constant 1 : i32
    %8 = arith.addi %0, %c1_i32 : i32
    %9 = arith.index_cast %8 : i32 to index
    %10 = memref.load %arg1[%9] : memref<16xi32, #tpu.memory_space<smem>>
    %c0_i32_4 = arith.constant 0 : i32
    %c0_i32_5 = arith.constant 0 : i32
    %11 = tpu.memref_slice %arg2[%10, %c0_i32_5] : memref<64x256xf32, #tpu.memory_space<any>> -> memref<1x256xf32, #tpu.memory_space<any>>
    %c1_i32_6 = arith.constant 1 : i32
    %c0_i32_7 = arith.constant 0 : i32
    %12 = tpu.memref_slice %arg5[%c1_i32_6, %c0_i32_7] : memref<16x256xf32, #tpu.memory_space<vmem>> -> memref<1x256xf32, #tpu.memory_space<vmem>>
    %13 = tpu.memref_slice %arg6[%c0_i32_4] : memref<1x!tpu.dma_semaphore, #tpu.memory_space<semaphore_mem>> -> memref<1x!tpu.dma_semaphore, #tpu.memory_space<semaphore_mem>>
    %14 = tpu.memref_squeeze %13 : memref<1x!tpu.dma_semaphore, #tpu.memory_space<semaphore_mem>> -> memref<!tpu.dma_semaphore, #tpu.memory_space<semaphore_mem>>
    tpu.enqueue_dma source(%11 : memref<1x256xf32, #tpu.memory_space<any>>) target(%12 : memref<1x256xf32, #tpu.memory_space<vmem>>) target_semaphore(%14 : memref<!tpu.dma_semaphore, #tpu.memory_space<semaphore_mem>>)
    %c2_i32 = arith.constant 2 : i32
    %15 = arith.addi %0, %c2_i32 : i32
    %16 = arith.index_cast %15 : i32 to index
    %17 = memref.load %arg1[%16] : memref<16xi32, #tpu.memory_space<smem>>
    %c0_i32_8 = arith.constant 0 : i32
    %c0_i32_9 = arith.constant 0 : i32
    %18 = tpu.memref_slice %arg2[%17, %c0_i32_9] : memref<64x256xf32, #tpu.memory_space<any>> -> memref<1x256xf32, #tpu.memory_space<any>>
    %c2_i32_10 = arith.constant 2 : i32
    %c0_i32_11 = arith.constant 0 : i32
    %19 = tpu.memref_slice %arg5[%c2_i32_10, %c0_i32_11] : memref<16x256xf32, #tpu.memory_space<vmem>> -> memref<1x256xf32, #tpu.memory_space<vmem>>
    %20 = tpu.memref_slice %arg6[%c0_i32_8] : memref<1x!tpu.dma_semaphore, #tpu.memory_space<semaphore_mem>> -> memref<1x!tpu.dma_semaphore, #tpu.memory_space<semaphore_mem>>
    %21 = tpu.memref_squeeze %20 : memref<1x!tpu.dma_semaphore, #tpu.memory_space<semaphore_mem>> -> memref<!tpu.dma_semaphore, #tpu.memory_space<semaphore_mem>>
    tpu.enqueue_dma source(%18 : memref<1x256xf32, #tpu.memory_space<any>>) target(%19 : memref<1x256xf32, #tpu.memory_space<vmem>>) target_semaphore(%21 : memref<!tpu.dma_semaphore, #tpu.memory_space<semaphore_mem>>)
    %c3_i32 = arith.constant 3 : i32
    %22 = arith.addi %0, %c3_i32 : i32
    %23 = arith.index_cast %22 : i32 to index
    %24 = memref.load %arg1[%23] : memref<16xi32, #tpu.memory_space<smem>>
    %c0_i32_12 = arith.constant 0 : i32
    %c0_i32_13 = arith.constant 0 : i32
    %25 = tpu.memref_slice %arg2[%24, %c0_i32_13] : memref<64x256xf32, #tpu.memory_space<any>> -> memref<1x256xf32, #tpu.memory_space<any>>
    %c3_i32_14 = arith.constant 3 : i32
    %c0_i32_15 = arith.constant 0 : i32
    %26 = tpu.memref_slice %arg5[%c3_i32_14, %c0_i32_15] : memref<16x256xf32, #tpu.memory_space<vmem>> -> memref<1x256xf32, #tpu.memory_space<vmem>>
    %27 = tpu.memref_slice %arg6[%c0_i32_12] : memref<1x!tpu.dma_semaphore, #tpu.memory_space<semaphore_mem>> -> memref<1x!tpu.dma_semaphore, #tpu.memory_space<semaphore_mem>>
    %28 = tpu.memref_squeeze %27 : memref<1x!tpu.dma_semaphore, #tpu.memory_space<semaphore_mem>> -> memref<!tpu.dma_semaphore, #tpu.memory_space<semaphore_mem>>
    tpu.enqueue_dma source(%25 : memref<1x256xf32, #tpu.memory_space<any>>) target(%26 : memref<1x256xf32, #tpu.memory_space<vmem>>) target_semaphore(%28 : memref<!tpu.dma_semaphore, #tpu.memory_space<semaphore_mem>>)
    %c4_i32 = arith.constant 4 : i32
    %29 = arith.addi %0, %c4_i32 : i32
    %30 = arith.index_cast %29 : i32 to index
    %31 = memref.load %arg1[%30] : memref<16xi32, #tpu.memory_space<smem>>
    %c0_i32_16 = arith.constant 0 : i32
    %c0_i32_17 = arith.constant 0 : i32
    %32 = tpu.memref_slice %arg2[%31, %c0_i32_17] : memref<64x256xf32, #tpu.memory_space<any>> -> memref<1x256xf32, #tpu.memory_space<any>>
    %c4_i32_18 = arith.constant 4 : i32
    %c0_i32_19 = arith.constant 0 : i32
    %33 = tpu.memref_slice %arg5[%c4_i32_18, %c0_i32_19] : memref<16x256xf32, #tpu.memory_space<vmem>> -> memref<1x256xf32, #tpu.memory_space<vmem>>
    %34 = tpu.memref_slice %arg6[%c0_i32_16] : memref<1x!tpu.dma_semaphore, #tpu.memory_space<semaphore_mem>> -> memref<1x!tpu.dma_semaphore, #tpu.memory_space<semaphore_mem>>
    %35 = tpu.memref_squeeze %34 : memref<1x!tpu.dma_semaphore, #tpu.memory_space<semaphore_mem>> -> memref<!tpu.dma_semaphore, #tpu.memory_space<semaphore_mem>>
    tpu.enqueue_dma source(%32 : memref<1x256xf32, #tpu.memory_space<any>>) target(%33 : memref<1x256xf32, #tpu.memory_space<vmem>>) target_semaphore(%35 : memref<!tpu.dma_semaphore, #tpu.memory_space<semaphore_mem>>)
    %c5_i32 = arith.constant 5 : i32
    %36 = arith.addi %0, %c5_i32 : i32
    %37 = arith.index_cast %36 : i32 to index
    %38 = memref.load %arg1[%37] : memref<16xi32, #tpu.memory_space<smem>>
    %c0_i32_20 = arith.constant 0 : i32
    %c0_i32_21 = arith.constant 0 : i32
    %39 = tpu.memref_slice %arg2[%38, %c0_i32_21] : memref<64x256xf32, #tpu.memory_space<any>> -> memref<1x256xf32, #tpu.memory_space<any>>
    %c5_i32_22 = arith.constant 5 : i32
    %c0_i32_23 = arith.constant 0 : i32
    %40 = tpu.memref_slice %arg5[%c5_i32_22, %c0_i32_23] : memref<16x256xf32, #tpu.memory_space<vmem>> -> memref<1x256xf32, #tpu.memory_space<vmem>>
    %41 = tpu.memref_slice %arg6[%c0_i32_20] : memref<1x!tpu.dma_semaphore, #tpu.memory_space<semaphore_mem>> -> memref<1x!tpu.dma_semaphore, #tpu.memory_space<semaphore_mem>>
    %42 = tpu.memref_squeeze %41 : memref<1x!tpu.dma_semaphore, #tpu.memory_space<semaphore_mem>> -> memref<!tpu.dma_semaphore, #tpu.memory_space<semaphore_mem>>
    tpu.enqueue_dma source(%39 : memref<1x256xf32, #tpu.memory_space<any>>) target(%40 : memref<1x256xf32, #tpu.memory_space<vmem>>) target_semaphore(%42 : memref<!tpu.dma_semaphore, #tpu.memory_space<semaphore_mem>>)
    %c6_i32 = arith.constant 6 : i32
    %43 = arith.addi %0, %c6_i32 : i32
    %44 = arith.index_cast %43 : i32 to index
    %45 = memref.load %arg1[%44] : memref<16xi32, #tpu.memory_space<smem>>
    %c0_i32_24 = arith.constant 0 : i32
    %c0_i32_25 = arith.constant 0 : i32
    %46 = tpu.memref_slice %arg2[%45, %c0_i32_25] : memref<64x256xf32, #tpu.memory_space<any>> -> memref<1x256xf32, #tpu.memory_space<any>>
    %c6_i32_26 = arith.constant 6 : i32
    %c0_i32_27 = arith.constant 0 : i32
    %47 = tpu.memref_slice %arg5[%c6_i32_26, %c0_i32_27] : memref<16x256xf32, #tpu.memory_space<vmem>> -> memref<1x256xf32, #tpu.memory_space<vmem>>
    %48 = tpu.memref_slice %arg6[%c0_i32_24] : memref<1x!tpu.dma_semaphore, #tpu.memory_space<semaphore_mem>> -> memref<1x!tpu.dma_semaphore, #tpu.memory_space<semaphore_mem>>
    %49 = tpu.memref_squeeze %48 : memref<1x!tpu.dma_semaphore, #tpu.memory_space<semaphore_mem>> -> memref<!tpu.dma_semaphore, #tpu.memory_space<semaphore_mem>>
    tpu.enqueue_dma source(%46 : memref<1x256xf32, #tpu.memory_space<any>>) target(%47 : memref<1x256xf32, #tpu.memory_space<vmem>>) target_semaphore(%49 : memref<!tpu.dma_semaphore, #tpu.memory_space<semaphore_mem>>)
    %c7_i32 = arith.constant 7 : i32
    %50 = arith.addi %0, %c7_i32 : i32
    %51 = arith.index_cast %50 : i32 to index
    %52 = memref.load %arg1[%51] : memref<16xi32, #tpu.memory_space<smem>>
    %c0_i32_28 = arith.constant 0 : i32
    %c0_i32_29 = arith.constant 0 : i32
    %53 = tpu.memref_slice %arg2[%52, %c0_i32_29] : memref<64x256xf32, #tpu.memory_space<any>> -> memref<1x256xf32, #tpu.memory_space<any>>
    %c7_i32_30 = arith.constant 7 : i32
    %c0_i32_31 = arith.constant 0 : i32
    %54 = tpu.memref_slice %arg5[%c7_i32_30, %c0_i32_31] : memref<16x256xf32, #tpu.memory_space<vmem>> -> memref<1x256xf32, #tpu.memory_space<vmem>>
    %55 = tpu.memref_slice %arg6[%c0_i32_28] : memref<1x!tpu.dma_semaphore, #tpu.memory_space<semaphore_mem>> -> memref<1x!tpu.dma_semaphore, #tpu.memory_space<semaphore_mem>>
    %56 = tpu.memref_squeeze %55 : memref<1x!tpu.dma_semaphore, #tpu.memory_space<semaphore_mem>> -> memref<!tpu.dma_semaphore, #tpu.memory_space<semaphore_mem>>
    tpu.enqueue_dma source(%53 : memref<1x256xf32, #tpu.memory_space<any>>) target(%54 : memref<1x256xf32, #tpu.memory_space<vmem>>) target_semaphore(%56 : memref<!tpu.dma_semaphore, #tpu.memory_space<semaphore_mem>>)
    %c8_i32 = arith.constant 8 : i32
    %57 = arith.addi %0, %c8_i32 : i32
    %58 = arith.index_cast %57 : i32 to index
    %59 = memref.load %arg1[%58] : memref<16xi32, #tpu.memory_space<smem>>
    %c0_i32_32 = arith.constant 0 : i32
    %c0_i32_33 = arith.constant 0 : i32
    %60 = tpu.memref_slice %arg2[%59, %c0_i32_33] : memref<64x256xf32, #tpu.memory_space<any>> -> memref<1x256xf32, #tpu.memory_space<any>>
    %c8_i32_34 = arith.constant 8 : i32
    %c0_i32_35 = arith.constant 0 : i32
    %61 = tpu.memref_slice %arg5[%c8_i32_34, %c0_i32_35] : memref<16x256xf32, #tpu.memory_space<vmem>> -> memref<1x256xf32, #tpu.memory_space<vmem>>
    %62 = tpu.memref_slice %arg6[%c0_i32_32] : memref<1x!tpu.dma_semaphore, #tpu.memory_space<semaphore_mem>> -> memref<1x!tpu.dma_semaphore, #tpu.memory_space<semaphore_mem>>
    %63 = tpu.memref_squeeze %62 : memref<1x!tpu.dma_semaphore, #tpu.memory_space<semaphore_mem>> -> memref<!tpu.dma_semaphore, #tpu.memory_space<semaphore_mem>>
    tpu.enqueue_dma source(%60 : memref<1x256xf32, #tpu.memory_space<any>>) target(%61 : memref<1x256xf32, #tpu.memory_space<vmem>>) target_semaphore(%63 : memref<!tpu.dma_semaphore, #tpu.memory_space<semaphore_mem>>)
    %c9_i32 = arith.constant 9 : i32
    %64 = arith.addi %0, %c9_i32 : i32
    %65 = arith.index_cast %64 : i32 to index
    %66 = memref.load %arg1[%65] : memref<16xi32, #tpu.memory_space<smem>>
    %c0_i32_36 = arith.constant 0 : i32
    %c0_i32_37 = arith.constant 0 : i32
    %67 = tpu.memref_slice %arg2[%66, %c0_i32_37] : memref<64x256xf32, #tpu.memory_space<any>> -> memref<1x256xf32, #tpu.memory_space<any>>
    %c9_i32_38 = arith.constant 9 : i32
    %c0_i32_39 = arith.constant 0 : i32
    %68 = tpu.memref_slice %arg5[%c9_i32_38, %c0_i32_39] : memref<16x256xf32, #tpu.memory_space<vmem>> -> memref<1x256xf32, #tpu.memory_space<vmem>>
    %69 = tpu.memref_slice %arg6[%c0_i32_36] : memref<1x!tpu.dma_semaphore, #tpu.memory_space<semaphore_mem>> -> memref<1x!tpu.dma_semaphore, #tpu.memory_space<semaphore_mem>>
    %70 = tpu.memref_squeeze %69 : memref<1x!tpu.dma_semaphore, #tpu.memory_space<semaphore_mem>> -> memref<!tpu.dma_semaphore, #tpu.memory_space<semaphore_mem>>
    tpu.enqueue_dma source(%67 : memref<1x256xf32, #tpu.memory_space<any>>) target(%68 : memref<1x256xf32, #tpu.memory_space<vmem>>) target_semaphore(%70 : memref<!tpu.dma_semaphore, #tpu.memory_space<semaphore_mem>>)
    %c10_i32 = arith.constant 10 : i32
    %71 = arith.addi %0, %c10_i32 : i32
    %72 = arith.index_cast %71 : i32 to index
    %73 = memref.load %arg1[%72] : memref<16xi32, #tpu.memory_space<smem>>
    %c0_i32_40 = arith.constant 0 : i32
    %c0_i32_41 = arith.constant 0 : i32
    %74 = tpu.memref_slice %arg2[%73, %c0_i32_41] : memref<64x256xf32, #tpu.memory_space<any>> -> memref<1x256xf32, #tpu.memory_space<any>>
    %c10_i32_42 = arith.constant 10 : i32
    %c0_i32_43 = arith.constant 0 : i32
    %75 = tpu.memref_slice %arg5[%c10_i32_42, %c0_i32_43] : memref<16x256xf32, #tpu.memory_space<vmem>> -> memref<1x256xf32, #tpu.memory_space<vmem>>
    %76 = tpu.memref_slice %arg6[%c0_i32_40] : memref<1x!tpu.dma_semaphore, #tpu.memory_space<semaphore_mem>> -> memref<1x!tpu.dma_semaphore, #tpu.memory_space<semaphore_mem>>
    %77 = tpu.memref_squeeze %76 : memref<1x!tpu.dma_semaphore, #tpu.memory_space<semaphore_mem>> -> memref<!tpu.dma_semaphore, #tpu.memory_space<semaphore_mem>>
    tpu.enqueue_dma source(%74 : memref<1x256xf32, #tpu.memory_space<any>>) target(%75 : memref<1x256xf32, #tpu.memory_space<vmem>>) target_semaphore(%77 : memref<!tpu.dma_semaphore, #tpu.memory_space<semaphore_mem>>)
    %c11_i32 = arith.constant 11 : i32
    %78 = arith.addi %0, %c11_i32 : i32
    %79 = arith.index_cast %78 : i32 to index
    %80 = memref.load %arg1[%79] : memref<16xi32, #tpu.memory_space<smem>>
    %c0_i32_44 = arith.constant 0 : i32
    %c0_i32_45 = arith.constant 0 : i32
    %81 = tpu.memref_slice %arg2[%80, %c0_i32_45] : memref<64x256xf32, #tpu.memory_space<any>> -> memref<1x256xf32, #tpu.memory_space<any>>
    %c11_i32_46 = arith.constant 11 : i32
    %c0_i32_47 = arith.constant 0 : i32
    %82 = tpu.memref_slice %arg5[%c11_i32_46, %c0_i32_47] : memref<16x256xf32, #tpu.memory_space<vmem>> -> memref<1x256xf32, #tpu.memory_space<vmem>>
    %83 = tpu.memref_slice %arg6[%c0_i32_44] : memref<1x!tpu.dma_semaphore, #tpu.memory_space<semaphore_mem>> -> memref<1x!tpu.dma_semaphore, #tpu.memory_space<semaphore_mem>>
    %84 = tpu.memref_squeeze %83 : memref<1x!tpu.dma_semaphore, #tpu.memory_space<semaphore_mem>> -> memref<!tpu.dma_semaphore, #tpu.memory_space<semaphore_mem>>
    tpu.enqueue_dma source(%81 : memref<1x256xf32, #tpu.memory_space<any>>) target(%82 : memref<1x256xf32, #tpu.memory_space<vmem>>) target_semaphore(%84 : memref<!tpu.dma_semaphore, #tpu.memory_space<semaphore_mem>>)
    %c12_i32 = arith.constant 12 : i32
    %85 = arith.addi %0, %c12_i32 : i32
    %86 = arith.index_cast %85 : i32 to index
    %87 = memref.load %arg1[%86] : memref<16xi32, #tpu.memory_space<smem>>
    %c0_i32_48 = arith.constant 0 : i32
    %c0_i32_49 = arith.constant 0 : i32
    %88 = tpu.memref_slice %arg2[%87, %c0_i32_49] : memref<64x256xf32, #tpu.memory_space<any>> -> memref<1x256xf32, #tpu.memory_space<any>>
    %c12_i32_50 = arith.constant 12 : i32
    %c0_i32_51 = arith.constant 0 : i32
    %89 = tpu.memref_slice %arg5[%c12_i32_50, %c0_i32_51] : memref<16x256xf32, #tpu.memory_space<vmem>> -> memref<1x256xf32, #tpu.memory_space<vmem>>
    %90 = tpu.memref_slice %arg6[%c0_i32_48] : memref<1x!tpu.dma_semaphore, #tpu.memory_space<semaphore_mem>> -> memref<1x!tpu.dma_semaphore, #tpu.memory_space<semaphore_mem>>
    %91 = tpu.memref_squeeze %90 : memref<1x!tpu.dma_semaphore, #tpu.memory_space<semaphore_mem>> -> memref<!tpu.dma_semaphore, #tpu.memory_space<semaphore_mem>>
    tpu.enqueue_dma source(%88 : memref<1x256xf32, #tpu.memory_space<any>>) target(%89 : memref<1x256xf32, #tpu.memory_space<vmem>>) target_semaphore(%91 : memref<!tpu.dma_semaphore, #tpu.memory_space<semaphore_mem>>)
    %c13_i32 = arith.constant 13 : i32
    %92 = arith.addi %0, %c13_i32 : i32
    %93 = arith.index_cast %92 : i32 to index
    %94 = memref.load %arg1[%93] : memref<16xi32, #tpu.memory_space<smem>>
    %c0_i32_52 = arith.constant 0 : i32
    %c0_i32_53 = arith.constant 0 : i32
    %95 = tpu.memref_slice %arg2[%94, %c0_i32_53] : memref<64x256xf32, #tpu.memory_space<any>> -> memref<1x256xf32, #tpu.memory_space<any>>
    %c13_i32_54 = arith.constant 13 : i32
    %c0_i32_55 = arith.constant 0 : i32
    %96 = tpu.memref_slice %arg5[%c13_i32_54, %c0_i32_55] : memref<16x256xf32, #tpu.memory_space<vmem>> -> memref<1x256xf32, #tpu.memory_space<vmem>>
    %97 = tpu.memref_slice %arg6[%c0_i32_52] : memref<1x!tpu.dma_semaphore, #tpu.memory_space<semaphore_mem>> -> memref<1x!tpu.dma_semaphore, #tpu.memory_space<semaphore_mem>>
    %98 = tpu.memref_squeeze %97 : memref<1x!tpu.dma_semaphore, #tpu.memory_space<semaphore_mem>> -> memref<!tpu.dma_semaphore, #tpu.memory_space<semaphore_mem>>
    tpu.enqueue_dma source(%95 : memref<1x256xf32, #tpu.memory_space<any>>) target(%96 : memref<1x256xf32, #tpu.memory_space<vmem>>) target_semaphore(%98 : memref<!tpu.dma_semaphore, #tpu.memory_space<semaphore_mem>>)
    %c14_i32 = arith.constant 14 : i32
    %99 = arith.addi %0, %c14_i32 : i32
    %100 = arith.index_cast %99 : i32 to index
    %101 = memref.load %arg1[%100] : memref<16xi32, #tpu.memory_space<smem>>
    %c0_i32_56 = arith.constant 0 : i32
    %c0_i32_57 = arith.constant 0 : i32
    %102 = tpu.memref_slice %arg2[%101, %c0_i32_57] : memref<64x256xf32, #tpu.memory_space<any>> -> memref<1x256xf32, #tpu.memory_space<any>>
    %c14_i32_58 = arith.constant 14 : i32
    %c0_i32_59 = arith.constant 0 : i32
    %103 = tpu.memref_slice %arg5[%c14_i32_58, %c0_i32_59] : memref<16x256xf32, #tpu.memory_space<vmem>> -> memref<1x256xf32, #tpu.memory_space<vmem>>
    %104 = tpu.memref_slice %arg6[%c0_i32_56] : memref<1x!tpu.dma_semaphore, #tpu.memory_space<semaphore_mem>> -> memref<1x!tpu.dma_semaphore, #tpu.memory_space<semaphore_mem>>
    %105 = tpu.memref_squeeze %104 : memref<1x!tpu.dma_semaphore, #tpu.memory_space<semaphore_mem>> -> memref<!tpu.dma_semaphore, #tpu.memory_space<semaphore_mem>>
    tpu.enqueue_dma source(%102 : memref<1x256xf32, #tpu.memory_space<any>>) target(%103 : memref<1x256xf32, #tpu.memory_space<vmem>>) target_semaphore(%105 : memref<!tpu.dma_semaphore, #tpu.memory_space<semaphore_mem>>)
    %c15_i32 = arith.constant 15 : i32
    %106 = arith.addi %0, %c15_i32 : i32
    %107 = arith.index_cast %106 : i32 to index
    %108 = memref.load %arg1[%107] : memref<16xi32, #tpu.memory_space<smem>>
    %c0_i32_60 = arith.constant 0 : i32
    %c0_i32_61 = arith.constant 0 : i32
    %109 = tpu.memref_slice %arg2[%108, %c0_i32_61] : memref<64x256xf32, #tpu.memory_space<any>> -> memref<1x256xf32, #tpu.memory_space<any>>
    %c15_i32_62 = arith.constant 15 : i32
    %c0_i32_63 = arith.constant 0 : i32
    %110 = tpu.memref_slice %arg5[%c15_i32_62, %c0_i32_63] : memref<16x256xf32, #tpu.memory_space<vmem>> -> memref<1x256xf32, #tpu.memory_space<vmem>>
    %111 = tpu.memref_slice %arg6[%c0_i32_60] : memref<1x!tpu.dma_semaphore, #tpu.memory_space<semaphore_mem>> -> memref<1x!tpu.dma_semaphore, #tpu.memory_space<semaphore_mem>>
    %112 = tpu.memref_squeeze %111 : memref<1x!tpu.dma_semaphore, #tpu.memory_space<semaphore_mem>> -> memref<!tpu.dma_semaphore, #tpu.memory_space<semaphore_mem>>
    tpu.enqueue_dma source(%109 : memref<1x256xf32, #tpu.memory_space<any>>) target(%110 : memref<1x256xf32, #tpu.memory_space<vmem>>) target_semaphore(%112 : memref<!tpu.dma_semaphore, #tpu.memory_space<semaphore_mem>>)
    %c0_i32_64 = arith.constant 0 : i32
    %c0_i32_65 = arith.constant 0 : i32
    %c0_i32_66 = arith.constant 0 : i32
    %113 = tpu.memref_slice %arg2[%c0_i32_65, %c0_i32_66] : memref<64x256xf32, #tpu.memory_space<any>> -> memref<16x256xf32, #tpu.memory_space<any>>
    %114 = tpu.memref_slice %arg6[%c0_i32_64] : memref<1x!tpu.dma_semaphore, #tpu.memory_space<semaphore_mem>> -> memref<1x!tpu.dma_semaphore, #tpu.memory_space<semaphore_mem>>
    %115 = tpu.memref_squeeze %114 : memref<1x!tpu.dma_semaphore, #tpu.memory_space<semaphore_mem>> -> memref<!tpu.dma_semaphore, #tpu.memory_space<semaphore_mem>>
    tpu.wait_dma2 semaphore(%115 : memref<!tpu.dma_semaphore, #tpu.memory_space<semaphore_mem>>) src(%113 : memref<16x256xf32, #tpu.memory_space<any>>) dst(%arg5 : memref<16x256xf32, #tpu.memory_space<vmem>>)
    %c0 = arith.constant 0 : index
    %c0_67 = arith.constant 0 : index
    %116 = vector.load %arg5[%c0, %c0_67] : memref<16x256xf32, #tpu.memory_space<vmem>>, vector<16x128xf32>
    %c0_68 = arith.constant 0 : index
    %c0_69 = arith.constant 0 : index
    %117 = vector.load %arg3[%c0_68, %c0_69] : memref<16x128xf32, #tpu.memory_space<vmem>>, vector<16x128xf32>
    tpu.vector_store %arg3[%c0_68, %c0_69], %116 {strides = array<i32>} : memref<16x128xf32, #tpu.memory_space<vmem>>, vector<16x128xf32>,
    %c0_70 = arith.constant 0 : index
    %c128 = arith.constant 128 : index
    %118 = vector.load %arg5[%c0_70, %c128] : memref<16x256xf32, #tpu.memory_space<vmem>>, vector<16x128xf32>
    %c0_71 = arith.constant 0 : index
    %c0_72 = arith.constant 0 : index
    %119 = vector.load %arg4[%c0_71, %c0_72] : memref<16x128xf32, #tpu.memory_space<vmem>>, vector<16x128xf32>
    tpu.vector_store %arg4[%c0_71, %c0_72], %118 {strides = array<i32>} : memref<16x128xf32, #tpu.memory_space<vmem>>, vector<16x128xf32>,
    return
  }
  func.func @transform_1(%arg0: i32, %arg1: memref<16xi32, #tpu.memory_space<smem>>) -> (i32, i32) {
    %c0_i32 = arith.constant 0 : i32
    %c0_i32_0 = arith.constant 0 : i32
    return %arg0, %c0_i32 : i32, i32
  }
  func.func @transform_2(%arg0: i32, %arg1: memref<16xi32, #tpu.memory_space<smem>>) -> (i32, i32) {
    %c0_i32 = arith.constant 0 : i32
    %c0_i32_0 = arith.constant 0 : i32
    return %arg0, %c0_i32 : i32, i32
  }
}

</mosaic_0001>

<llo_original>
// kernel: tpu_custom_call.1
$region0: #{tpu_custom_call.1}
  #allocation0 [shape = 'u32[]', space=smem, size = 0x4, offset = 0x4, fixed_abs, tag = 'smem constant byte address 0x4 - core index']
  #allocation1 [shape = 'u32[144,128]{1,0:T(1,128)}', space=vmem, size = 0x12000, scoped, tag = 'internal scratch']
  #allocation2 [shape = 'f32[16,256]{1,0:T(8,128)}', space=vmem, size = 0x4000, scoped, tag = 'scratch operand']
  #allocation3 [shape = 's32[1]{0}', space=sflag, size = 0x4, scoped, tag = 'scratch operand']
  #allocation4 [shape = 's32[1]{0}', space=sflag, size = 0x4, scoped, tag = 'scoped memory for tpu_custom_call.1']
  #allocation5 [shape = 'u8[512]{0}', space=smem, size = 0x200, scoped, tag = 'prefetched SMEM operand 0']
  #allocation10 [shape = 's32[]', space=sflag, size = 0x4, offset = 0, fixed_abs, tag = 'sflag constant byte address 0x0 - dummy sync flag']
  #allocation11 [shape = 's32[]', space=sflag, size = 0x4, offset = 0, fixed_abs, tag = 'sflag constant byte address 0x0 - dummy sync flag']
  #allocation12 [shape = 's32[]', space=sflag, size = 0x4, offset = 0, fixed_abs, tag = 'sflag constant byte address 0x0 - dummy sync flag']
  #allocation13 [shape = 's32[]', space=sflag, size = 0x4, offset = 0, fixed_abs, tag = 'sflag constant byte address 0x0 - dummy sync flag']
  #allocation14 [shape = 's32[]', space=sflag, size = 0x4, offset = 0, fixed_abs, tag = 'sflag constant byte address 0x0 - dummy sync flag']
  #allocation15 [shape = 's32[]', space=sflag, size = 0x4, offset = 0, fixed_abs, tag = 'sflag constant byte address 0x0 - dummy sync flag']
  #allocation16 [shape = 's32[]', space=sflag, size = 0x4, offset = 0, fixed_abs, tag = 'sflag constant byte address 0x0 - dummy sync flag']
  #allocation17 [shape = 's32[]', space=sflag, size = 0x4, offset = 0, fixed_abs, tag = 'sflag constant byte address 0x0 - dummy sync flag']
  #allocation18 [shape = 's32[]', space=sflag, size = 0x4, offset = 0, fixed_abs, tag = 'sflag constant byte address 0x0 - dummy sync flag']
  #allocation19 [shape = 's32[]', space=sflag, size = 0x4, offset = 0, fixed_abs, tag = 'sflag constant byte address 0x0 - dummy sync flag']
  #allocation20 [shape = 's32[]', space=sflag, size = 0x4, offset = 0, fixed_abs, tag = 'sflag constant byte address 0x0 - dummy sync flag']
  #allocation21 [shape = 's32[]', space=sflag, size = 0x4, offset = 0, fixed_abs, tag = 'sflag constant byte address 0x0 - dummy sync flag']
  #allocation22 [shape = 's32[]', space=sflag, size = 0x4, offset = 0, fixed_abs, tag = 'sflag constant byte address 0x0 - dummy sync flag']
  #allocation23 [shape = 's32[]', space=sflag, size = 0x4, offset = 0, fixed_abs, tag = 'sflag constant byte address 0x0 - dummy sync flag']
  #allocation24 [shape = 's32[]', space=sflag, size = 0x4, offset = 0, fixed_abs, tag = 'sflag constant byte address 0x0 - dummy sync flag']
  #allocation25 [shape = 's32[]', space=sflag, size = 0x4, offset = 0, fixed_abs, tag = 'sflag constant byte address 0x0 - dummy sync flag']
  %s0 = inlined_call_operand.hbm [shape: s32[16], index: 0, kind: input, shape index: {}]
  %s1 = inlined_call_operand.hbm [shape: f32[64,256], index: 1, kind: input, shape index: {}]
  %s2 = inlined_call_operand.hbm [shape: f32[16,128], index: 2, kind: output, shape index: {0}]
  %s3 = inlined_call_operand.hbm [shape: f32[16,128], index: 3, kind: output, shape index: {1}]
  %4 = xla_tuple %s2, %s3
  %s5 = sld [smem:[#allocation0]]
  $region18: #{tpu_custom_call.1} parent=0
    _
  %s7 = ssub.s32 1, %s5
  %s8 = scalar_select 0, %s7, %s5
  %10 = dma.hbm_to_smem %s0, 16, [#allocation5], [#allocation4]
  %11 = dma.done [#allocation4], 16
  %12 = sfence
  $region1: #{tpu_custom_call.1} parent=0
    #allocation6 [shape = 'u8[8192]{0}', space=vmem, size = 0x2000, scoped, tag = 'output window, operand 0, single buffered']
    #allocation7 [shape = 's32[1]{0}', space=sflag, size = 0x4, scoped, tag = 'scoped memory for tpu_custom_call.1']
    #allocation8 [shape = 'u8[8192]{0}', space=vmem, size = 0x2000, scoped, tag = 'output window, operand 1, single buffered']
    #allocation9 [shape = 's32[1]{0}', space=sflag, size = 0x4, scoped, tag = 'scoped memory for tpu_custom_call.1']
    %13 = vsyncpa [#allocation7], 0
    %14 = vsyncpa [#allocation9], 0
    %s15 = smul.u32 0, 16
    %s16 = sld [smem:[#allocation5 + %s15]]
    %s17 = sshrl.u32 %s16, 3
    %s18 = sand.u32 %s16, 7
    %s19 = smul.u32 %s17, 16
    %s20 = sadd.s32 %s18, %s19
    %s21 = smul.addr %s20, 16
    %s22 = scalar_lea.hbm %s1, %s21
    %s24 = sshll.u32 [#allocation2], 4
    %s25 = int_to_ptr.vmem [resolvable:$true] %s24
    %27 = dma.hbm_to_vmem [thread:$0]  %s22, 32, %s25, [#allocation3], 128, 128, 1
    %s28 = sadd.s32 %s15, 1
    %s29 = sld [smem:[#allocation5 + %s28]]
    %s30 = sshrl.u32 %s29, 3
    %s31 = sand.u32 %s29, 7
    %s32 = smul.u32 %s30, 16
    %s33 = sadd.s32 %s31, %s32
    %s34 = smul.addr %s33, 16
    %s35 = scalar_lea.hbm %s1, %s34
    %s36 = scalar_lea.vmem [#allocation2], 1
    %s38 = sshll.u32 %s36, 4
    %s39 = int_to_ptr.vmem [resolvable:$true] %s38
    %41 = dma.hbm_to_vmem [thread:$0]  %s35, 32, %s39, [#allocation3], 128, 128, 1
    %s42 = sadd.s32 %s15, 2
    %s43 = sld [smem:[#allocation5 + %s42]]
    %s44 = sshrl.u32 %s43, 3
    %s45 = sand.u32 %s43, 7
    %s46 = smul.u32 %s44, 16
    %s47 = sadd.s32 %s45, %s46
    %s48 = smul.addr %s47, 16
    %s49 = scalar_lea.hbm %s1, %s48
    %s50 = scalar_lea.vmem [#allocation2], 2
    %s52 = sshll.u32 %s50, 4
    %s53 = int_to_ptr.vmem [resolvable:$true] %s52
    %55 = dma.hbm_to_vmem [thread:$0]  %s49, 32, %s53, [#allocation3], 128, 128, 1
    %s56 = sadd.s32 %s15, 3
    %s57 = sld [smem:[#allocation5 + %s56]]
    %s58 = sshrl.u32 %s57, 3
    %s59 = sand.u32 %s57, 7
    %s60 = smul.u32 %s58, 16
    %s61 = sadd.s32 %s59, %s60
    %s62 = smul.addr %s61, 16
    %s63 = scalar_lea.hbm %s1, %s62
    %s64 = scalar_lea.vmem [#allocation2], 3
    %s66 = sshll.u32 %s64, 4
    %s67 = int_to_ptr.vmem [resolvable:$true] %s66
    %69 = dma.hbm_to_vmem [thread:$0]  %s63, 32, %s67, [#allocation3], 128, 128, 1
    %s70 = sadd.s32 %s15, 4
    %s71 = sld [smem:[#allocation5 + %s70]]
    %s72 = sshrl.u32 %s71, 3
    %s73 = sand.u32 %s71, 7
    %s74 = smul.u32 %s72, 16
    %s75 = sadd.s32 %s73, %s74
    %s76 = smul.addr %s75, 16
    %s77 = scalar_lea.hbm %s1, %s76
    %s78 = scalar_lea.vmem [#allocation2], 4
    %s80 = sshll.u32 %s78, 4
    %s81 = int_to_ptr.vmem [resolvable:$true] %s80
    %83 = dma.hbm_to_vmem [thread:$0]  %s77, 32, %s81, [#allocation3], 128, 128, 1
    %s84 = sadd.s32 %s15, 5
    %s85 = sld [smem:[#allocation5 + %s84]]
    %s86 = sshrl.u32 %s85, 3
    %s87 = sand.u32 %s85, 7
    %s88 = smul.u32 %s86, 16
    %s89 = sadd.s32 %s87, %s88
    %s90 = smul.addr %s89, 16
    %s91 = scalar_lea.hbm %s1, %s90
    %s92 = scalar_lea.vmem [#allocation2], 5
    %s94 = sshll.u32 %s92, 4
    %s95 = int_to_ptr.vmem [resolvable:$true] %s94
    %97 = dma.hbm_to_vmem [thread:$0]  %s91, 32, %s95, [#allocation3], 128, 128, 1
    %s98 = sadd.s32 %s15, 6
    %s99 = sld [smem:[#allocation5 + %s98]]
    %s100 = sshrl.u32 %s99, 3
    %s101 = sand.u32 %s99, 7
    %s102 = smul.u32 %s100, 16
    %s103 = sadd.s32 %s101, %s102
    %s104 = smul.addr %s103, 16
    %s105 = scalar_lea.hbm %s1, %s104
    %s106 = scalar_lea.vmem [#allocation2], 6
    %s108 = sshll.u32 %s106, 4
    %s109 = int_to_ptr.vmem [resolvable:$true] %s108
    %111 = dma.hbm_to_vmem [thread:$0]  %s105, 32, %s109, [#allocation3], 128, 128, 1
    %s112 = sadd.s32 %s15, 7
    %s113 = sld [smem:[#allocation5 + %s112]]
    %s114 = sshrl.u32 %s113, 3
    %s115 = sand.u32 %s113, 7
    %s116 = smul.u32 %s114, 16
    %s117 = sadd.s32 %s115, %s116
    %s118 = smul.addr %s117, 16
    %s119 = scalar_lea.hbm %s1, %s118
    %s120 = scalar_lea.vmem [#allocation2], 7
    %s122 = sshll.u32 %s120, 4
    %s123 = int_to_ptr.vmem [resolvable:$true] %s122
    %125 = dma.hbm_to_vmem [thread:$0]  %s119, 32, %s123, [#allocation3], 128, 128, 1
    %s126 = sadd.s32 %s15, 8
    %s127 = sld [smem:[#allocation5 + %s126]]
    %s128 = sshrl.u32 %s127, 3
    %s129 = sand.u32 %s127, 7
    %s130 = smul.u32 %s128, 16
    %s131 = sadd.s32 %s129, %s130
    %s132 = smul.addr %s131, 16
    %s133 = scalar_lea.hbm %s1, %s132
    %s134 = scalar_lea.vmem [#allocation2], 16
    %s136 = sshll.u32 %s134, 4
    %s137 = int_to_ptr.vmem [resolvable:$true] %s136
    %139 = dma.hbm_to_vmem [thread:$0]  %s133, 32, %s137, [#allocation3], 128, 128, 1
    %s140 = sadd.s32 %s15, 9
    %s141 = sld [smem:[#allocation5 + %s140]]
    %s142 = sshrl.u32 %s141, 3
    %s143 = sand.u32 %s141, 7
    %s144 = smul.u32 %s142, 16
    %s145 = sadd.s32 %s143, %s144
    %s146 = smul.addr %s145, 16
    %s147 = scalar_lea.hbm %s1, %s146
    %s148 = scalar_lea.vmem [#allocation2], 17
    %s150 = sshll.u32 %s148, 4
    %s151 = int_to_ptr.vmem [resolvable:$true] %s150
    %153 = dma.hbm_to_vmem [thread:$0]  %s147, 32, %s151, [#allocation3], 128, 128, 1
    %s154 = sadd.s32 %s15, 10
    %s155 = sld [smem:[#allocation5 + %s154]]
    %s156 = sshrl.u32 %s155, 3
    %s157 = sand.u32 %s155, 7
    %s158 = smul.u32 %s156, 16
    %s159 = sadd.s32 %s157, %s158
    %s160 = smul.addr %s159, 16
    %s161 = scalar_lea.hbm %s1, %s160
    %s162 = scalar_lea.vmem [#allocation2], 18
    %s164 = sshll.u32 %s162, 4
    %s165 = int_to_ptr.vmem [resolvable:$true] %s164
    %167 = dma.hbm_to_vmem [thread:$0]  %s161, 32, %s165, [#allocation3], 128, 128, 1
    %s168 = sadd.s32 %s15, 11
    %s169 = sld [smem:[#allocation5 + %s168]]
    %s170 = sshrl.u32 %s169, 3
    %s171 = sand.u32 %s169, 7
    %s172 = smul.u32 %s170, 16
    %s173 = sadd.s32 %s171, %s172
    %s174 = smul.addr %s173, 16
    %s175 = scalar_lea.hbm %s1, %s174
    %s176 = scalar_lea.vmem [#allocation2], 19
    %s178 = sshll.u32 %s176, 4
    %s179 = int_to_ptr.vmem [resolvable:$true] %s178
    %181 = dma.hbm_to_vmem [thread:$0]  %s175, 32, %s179, [#allocation3], 128, 128, 1
    %s182 = sadd.s32 %s15, 12
    %s183 = sld [smem:[#allocation5 + %s182]]
    %s184 = sshrl.u32 %s183, 3
    %s185 = sand.u32 %s183, 7
    %s186 = smul.u32 %s184, 16
    %s187 = sadd.s32 %s185, %s186
    %s188 = smul.addr %s187, 16
    %s189 = scalar_lea.hbm %s1, %s188
    %s190 = scalar_lea.vmem [#allocation2], 20
    %s192 = sshll.u32 %s190, 4
    %s193 = int_to_ptr.vmem [resolvable:$true] %s192
    %195 = dma.hbm_to_vmem [thread:$0]  %s189, 32, %s193, [#allocation3], 128, 128, 1
    %s196 = sadd.s32 %s15, 13
    %s197 = sld [smem:[#allocation5 + %s196]]
    %s198 = sshrl.u32 %s197, 3
    %s199 = sand.u32 %s197, 7
    %s200 = smul.u32 %s198, 16
    %s201 = sadd.s32 %s199, %s200
    %s202 = smul.addr %s201, 16
    %s203 = scalar_lea.hbm %s1, %s202
    %s204 = scalar_lea.vmem [#allocation2], 21
    %s206 = sshll.u32 %s204, 4
    %s207 = int_to_ptr.vmem [resolvable:$true] %s206
    %209 = dma.hbm_to_vmem [thread:$0]  %s203, 32, %s207, [#allocation3], 128, 128, 1
    %s210 = sadd.s32 %s15, 14
    %s211 = sld [smem:[#allocation5 + %s210]]
    %s212 = sshrl.u32 %s211, 3
    %s213 = sand.u32 %s211, 7
    %s214 = smul.u32 %s212, 16
    %s215 = sadd.s32 %s213, %s214
    %s216 = smul.addr %s215, 16
    %s217 = scalar_lea.hbm %s1, %s216
    %s218 = scalar_lea.vmem [#allocation2], 22
    %s220 = sshll.u32 %s218, 4
    %s221 = int_to_ptr.vmem [resolvable:$true] %s220
    %223 = dma.hbm_to_vmem [thread:$0]  %s217, 32, %s221, [#allocation3], 128, 128, 1
    %s224 = sadd.s32 %s15, 15
    %s225 = sld [smem:[#allocation5 + %s224]]
    %s226 = sshrl.u32 %s225, 3
    %s227 = sand.u32 %s225, 7
    %s228 = smul.u32 %s226, 16
    %s229 = sadd.s32 %s227, %s228
    %s230 = smul.addr %s229, 16
    %s231 = scalar_lea.hbm %s1, %s230
    %s232 = scalar_lea.vmem [#allocation2], 23
    %s234 = sshll.u32 %s232, 4
    %s235 = int_to_ptr.vmem [resolvable:$true] %s234
    %237 = dma.hbm_to_vmem [thread:$0]  %s231, 32, %s235, [#allocation3], 128, 128, 1
    %s238 = smul.u32 8, 2
    %s239 = smul.u32 %s238, 2
    %s240 = sshll.u32 %s239, 4
    %241 = dma.done [#allocation3], %s240
    %v242 = vld [vmem:[#allocation2] sm:$0xff]
    %v243 = vld [vmem:[#allocation2 + $0x10] sm:$0xff]
    %244 = vst [vmem:[#allocation6] sm:$0xff] %v242
    %245 = vst [vmem:[#allocation6 + $0x8] sm:$0xff] %v243
    %v246 = vld [vmem:[#allocation2 + $0x8] sm:$0xff]
    %v247 = vld [vmem:[#allocation2 + $0x18] sm:$0xff]
    %248 = vst [vmem:[#allocation8] sm:$0xff] %v246
    %249 = vst [vmem:[#allocation8 + $0x8] sm:$0xff] %v247
    // Predicated region
    $region2: #{tpu_custom_call.1} parent=1 // pred_check
      _
    $region3: #{tpu_custom_call.1} parent=1 // pred_check_branch
      %251 = sbr.rel (0) target = $region5
    $region4: #{tpu_custom_call.1} parent=1 // pred_region
      %s253 = ssub.s32 256, 256
      %254 = vsyncadd [#allocation7], %s253
      %s255 = sshll.u32 [#allocation6], 4
      %s256 = int_to_ptr.vmem [resolvable:$true] %s255
      %261 = dma.vmem_to_hbm [thread:$0]  %s256, 256, %s2, [#allocation7], 128, 128, 8
    $region5: #{tpu_custom_call.1} parent=1 // pred_fallthru
      _
    // Predicated region
    $region6: #{tpu_custom_call.1} parent=1 // pred_check
      _
    $region7: #{tpu_custom_call.1} parent=1 // pred_check_branch
      %263 = sbr.rel (0) target = $region9
    $region8: #{tpu_custom_call.1} parent=1 // pred_region
      %s265 = ssub.s32 256, 256
      %266 = vsyncadd [#allocation9], %s265
      %s267 = sshll.u32 [#allocation8], 4
      %s268 = int_to_ptr.vmem [resolvable:$true] %s267
      %273 = dma.vmem_to_hbm [thread:$0]  %s268, 256, %s3, [#allocation9], 128, 128, 8
    $region9: #{tpu_custom_call.1} parent=1 // pred_fallthru
      _
    // Predicated region
    $region10: #{tpu_custom_call.1} parent=1 // pred_check
      _
    $region11: #{tpu_custom_call.1} parent=1 // pred_check_branch
      %275 = sbr.rel (0) target = $region13
    $region12: #{tpu_custom_call.1} parent=1 // pred_region
      %276 = dma.done [#allocation7], 256
    $region13: #{tpu_custom_call.1} parent=1 // pred_fallthru
      _
    // Predicated region
    $region14: #{tpu_custom_call.1} parent=1 // pred_check
      _
    $region15: #{tpu_custom_call.1} parent=1 // pred_check_branch
      %278 = sbr.rel (0) target = $region17
    $region16: #{tpu_custom_call.1} parent=1 // pred_region
      %279 = dma.done [#allocation9], 256
    $region17: #{tpu_custom_call.1} parent=1 // pred_fallthru
      _
    %280 = vsyncpa [#allocation7], 1
    %281 = vsyncpa [#allocation9], 1
  %282 = vsyncmov [#allocation3]
  %s283 = vpop.sfrf %282
  %p284 = scmp.eq.s32.totalorder %s283, 0
  %p285 = pneg %p284
  %287 = shalt.err (%p285)

</llo_original>
